<compile_context>
chip_gen: v6e
topology: v6e:2x2x1
jax: 0.10.0
libtpu: 0.0.40
codegen_flags: <defaults>
</compile_context>

<pallas_src>
import jax
import jax.numpy as jnp
from jax.experimental import pallas as pl
from jax.experimental.pallas import tpu as pltpu


def _round_up(v, m):
    return ((v + m - 1) // m) * m


def _socs_kernel(x_ref, idx_ref, w1_ref, b1_ref, w2_ref, b2_ref, out_ref,
                 acc_ref, cnt_ref):
    # x_ref   (tA, Din)  f32 atom features of this atom tile
    # idx_ref (1, tA)    i32 molecule id per atom (padding = out-of-range id)
    # w1_ref  (Din, H)   bf16 (pre-cast in wrapper), b1_ref (1, H) f32
    # w2_ref  (H, Dout)  f32, b2_ref (1, Dout) f32
    # out_ref (tM, Dout) written on the last atom step only
    # acc_ref (tM, H)    f32 resident per-molecule sum of hidden activations
    # cnt_ref (tM, 1)    f32 resident per-molecule atom counts
    a = pl.program_id(2)

    @pl.when(a == 0)
    def _init():
        acc_ref[...] = jnp.zeros_like(acc_ref)
        cnt_ref[...] = jnp.zeros_like(cnt_ref)

    # Hidden layer + SiLU: bf16 operands (w1 pre-cast), f32 MXU accumulation.
    h = jnp.dot(x_ref[...].astype(jnp.bfloat16), w1_ref[...],
                preferred_element_type=jnp.float32) + b1_ref[...]
    h = h * jax.nn.sigmoid(h)

    # Tile-local one-hot segment membership: (tM,1) column iota vs (1,tA) ids.
    # (No (tM,tA) iota/add temporaries — only the broadcast compare + one cast.)
    tM = acc_ref.shape[0]
    tA = h.shape[0]
    col = jax.lax.broadcasted_iota(jnp.int32, (tM, 1), 0) + pl.program_id(1) * tM
    hit = (col == idx_ref[...]).astype(jnp.float32)        # (tM, tA); padding never matches

    # Segment-sum hidden activations and atom counts — both on the MXU, in f32,
    # so the per-atom accumulation does not pick up bf16 rounding.
    acc_ref[...] += jnp.dot(hit, h, preferred_element_type=jnp.float32)
    cnt_ref[...] += jnp.dot(hit, jnp.ones((tA, 1), jnp.float32),
                            preferred_element_type=jnp.float32)

    # Finalize: output layer applied once per molecule tile; the output bias is
    # added once per contributing atom via the counts.
    @pl.when(a == pl.num_programs(2) - 1)
    def _finalize():
        out = jnp.dot(acc_ref[...], w2_ref[...], preferred_element_type=jnp.float32)
        out_ref[...] = out + cnt_ref[...] * b2_ref[...]


def socs_forward(x, idx_m, w1, b1, w2, b2, maxm, *,
                 tile_atoms=4096, tile_mols=2048, n_core_splits=2):
    """x: (n_atoms, n_in) f32; idx_m: (n_atoms,) int32 (sorted); returns (maxm, n_out) f32."""
    n_atoms, n_in = x.shape
    n_hidden = w1.shape[1]
    n_out = w2.shape[1]

    # ---- Molecule tile ------------------------------------------------------
    # Cover every molecule with one resident accumulator whenever it fits the
    # cap, so grid[1] == 1 and the hidden layer is never recomputed.
    tM = min(_round_up(maxm, 8), _round_up(tile_mols, 8))
    m_pad = _round_up(maxm, tM)
    # TODO(synk): when maxm > tile_mols (grid[1] > 1) exploit sorted idx_m with
    # PrefetchScalarGridSpec(num_scalar_prefetch=1) carrying per-molecule-tile
    # atom ranges so x is not re-streamed / re-activated per molecule tile.

    # ---- Atom tile ----------------------------------------------------------
    # Lane axis, multiple of 128, as big as a ~40 MiB VMEM budget allows
    # (re-derived per shape so it is safe on v7x's 64 MiB physical VMEM too).
    tA = min(_round_up(tile_atoms, 128), _round_up(n_atoms, 128))
    budget = 40 * 1024 * 1024

    def _vmem_est(ta):
        return (2 * ta * n_in * 4            # x double-buffered
                + 2 * 8 * ta * 4             # idx tile (8-sublane padded), 2 bufs
                + 2 * tM * ta * 4            # one-hot mask temporaries
                + ta * n_hidden * 4          # hidden activations
                + ta * n_in * 2              # bf16 copy of the x tile
                + tM * n_hidden * 4          # hidden-sum accumulator
                + tM * 128 * 4               # counts (lane padded)
                + n_in * n_hidden * 2        # w1 (bf16)
                + n_hidden * n_out * 4)      # w2

    while tA > 128 and _vmem_est(tA) > budget:
        tA -= 128

    # ---- Atom-split axis ----------------------------------------------------
    # Second "parallel" grid dim so both v7x TensorCores are busy even when
    # grid[1] == 1; partial sums are combined in the wrapper. Never create more
    # splits than there are atom tiles.
    n_tiles = max(1, -(-_round_up(n_atoms, 128) // tA))
    n_splits = max(1, min(n_core_splits, n_tiles))
    a_pad = _round_up(n_atoms, n_splits * tA)
    a_per_split = a_pad // (n_splits * tA)

    # ---- Padding / operand prep --------------------------------------------
    # Padded idx entries use m_pad (out of range of every molecule tile column).
    x_p = jnp.pad(x.astype(jnp.float32), ((0, a_pad - n_atoms), (0, 0)))
    idx_p = jnp.pad(idx_m.astype(jnp.int32), (0, a_pad - n_atoms),
                    constant_values=m_pad).reshape(1, a_pad)
    w1_bf = w1.astype(jnp.bfloat16)                      # pre-cast once, halves DMA/VMEM
    b1_2d = b1.reshape(1, n_hidden).astype(jnp.float32)
    w2_f = w2.astype(jnp.float32)
    b2_2d = b2.reshape(1, n_out).astype(jnp.float32)

    grid = (n_splits, m_pad // tM, a_per_split)
    n_m_tiles = grid[1]

    cost = pl.CostEstimate(
        flops=(2 * a_pad * n_in * n_hidden * n_m_tiles       # hidden layer (per mol tile)
               + 2 * m_pad * a_pad * (n_hidden + 1)          # segment sums + counts
               + 2 * n_splits * m_pad * n_hidden * n_out),   # output layer
        transcendentals=a_pad * n_hidden * n_m_tiles,
        bytes_accessed=(4 * a_pad * (n_in + 1) * n_m_tiles   # x + idx (per mol tile)
                        + 2 * n_in * n_hidden                # w1 bf16
                        + 4 * (n_hidden + n_hidden * n_out + n_out)
                        + 4 * n_splits * m_pad * n_out),
    )

    out = pl.pallas_call(
        _socs_kernel,
        out_shape=jax.ShapeDtypeStruct((n_splits, m_pad, n_out), jnp.float32),
        grid_spec=pltpu.PrefetchScalarGridSpec(
            num_scalar_prefetch=0,
            grid=grid,
            in_specs=[
                pl.BlockSpec((tA, n_in),
                             lambda s, m, a: (s * a_per_split + a, 0)),   # x (streamed)
                pl.BlockSpec((1, tA),
                             lambda s, m, a: (0, s * a_per_split + a)),   # idx_m (streamed)
                pl.BlockSpec((n_in, n_hidden), lambda s, m, a: (0, 0)),   # w1 (resident, bf16)
                pl.BlockSpec((1, n_hidden), lambda s, m, a: (0, 0)),      # b1
                pl.BlockSpec((n_hidden, n_out), lambda s, m, a: (0, 0)),  # w2
                pl.BlockSpec((1, n_out), lambda s, m, a: (0, 0)),         # b2
            ],
            out_specs=pl.BlockSpec((None, tM, n_out), lambda s, m, a: (s, m, 0)),
            scratch_shapes=[
                pltpu.VMEM((tM, n_hidden), jnp.float32),  # per-molecule hidden sums
                pltpu.VMEM((tM, 1), jnp.float32),         # per-molecule atom counts
            ],
        ),
        compiler_params=pltpu.CompilerParams(
            dimension_semantics=("parallel", "parallel", "arbitrary"),
            vmem_limit_bytes=48 * 1024 * 1024),
        cost_estimate=cost,
    )(x_p, idx_p, w1_bf, b1_2d, w2_f, b2_2d)

    # Combine the atom-split partial sums and drop molecule padding.
    return out.sum(axis=0)[:maxm]


def socs_reference(x, idx_m, w1, b1, w2, b2, maxm):
    h = x @ w1 + b1
    h = h * jax.nn.sigmoid(h)
    y = h @ w2 + b2
    return jax.ops.segment_sum(y, idx_m, num_segments=maxm)


if __name__ == "__main__":
    # Small shapes consistent with the module defaults:
    #   n_in = 32, n_layers = 2, n_hidden = None -> pyramidal hidden = n_in // 2 = 16
    #   n_out = 4 spin-orbit couplings
    #   16 atoms in 2 molecules (7 + 9), idx_m sorted as SchNetPack guarantees.
    n_atoms, n_in, n_hidden, n_out = 16, 32, 16, 4

    key = jax.random.PRNGKey(0)
    kx, k1, k2, k3, k4 = jax.random.split(key, 5)

    x = jax.random.normal(kx, (n_atoms, n_in), dtype=jnp.float32)
    idx_m = jnp.array([0] * 7 + [1] * 9, dtype=jnp.int32)
    maxm = int(idx_m[-1]) + 1

    w1 = jax.random.normal(k1, (n_in, n_hidden), dtype=jnp.float32) * 0.1
    b1 = jax.random.normal(k2, (n_hidden,), dtype=jnp.float32) * 0.1
    w2 = jax.random.normal(k3, (n_hidden, n_out), dtype=jnp.float32) * 0.1
    b2 = jax.random.normal(k4, (n_out,), dtype=jnp.float32) * 0.1

    out = socs_forward(x, idx_m, w1, b1, w2, b2, maxm)
    out = jax.block_until_ready(out)

    ref = socs_reference(x, idx_m, w1, b1, w2, b2, maxm)
    assert out.shape == (maxm, n_out)
    # Only x @ w1 uses bf16 operands (f32 accumulation); segment sums and the
    # output layer are f32 -> tight tolerance vs the f32 reference.
    assert jnp.allclose(out, ref, atol=1e-2, rtol=1e-2), "Pallas output mismatch vs reference"

    print("KERNEL_OK")
</pallas_src>

<mosaic_0001>
module attributes {stable_mosaic.version = 11 : i64} {
  func.func @_socs_kernel(%arg0: i32, %arg1: i32, %arg2: i32, %arg3: memref<128x32xf32, #tpu.memory_space<vmem>>, %arg4: memref<1x128xi32, #tpu.memory_space<vmem>>, %arg5: memref<32x16xbf16, #tpu.memory_space<vmem>>, %arg6: memref<1x16xf32, #tpu.memory_space<vmem>>, %arg7: memref<16x4xf32, #tpu.memory_space<vmem>>, %arg8: memref<1x4xf32, #tpu.memory_space<vmem>>, %arg9: memref<1x8x4xf32, #tpu.memory_space<vmem>>, %arg10: memref<8x16xf32, #tpu.memory_space<vmem>>, %arg11: memref<8x1xf32, #tpu.memory_space<vmem>>) attributes {dimension_semantics = [#tpu.dimension_semantics<parallel>, #tpu.dimension_semantics<parallel>, #tpu.dimension_semantics<arbitrary>], iteration_bounds = array<i64: 1, 1, 1>, scalar_prefetch = 0 : i64, scratch_operands = 2 : i64, tpu.core_type = #tpu.core_type<tc>, window_params = [{transform_indices = @transform_0, window_bounds = array<i64: 128, 32>}, {transform_indices = @transform_1, window_bounds = array<i64: 1, 128>}, {pipeline_mode = #tpu.pipeline_mode<synchronous>, transform_indices = @transform_2, window_bounds = array<i64: 32, 16>}, {pipeline_mode = #tpu.pipeline_mode<synchronous>, transform_indices = @transform_3, window_bounds = array<i64: 1, 16>}, {pipeline_mode = #tpu.pipeline_mode<synchronous>, transform_indices = @transform_4, window_bounds = array<i64: 16, 4>}, {pipeline_mode = #tpu.pipeline_mode<synchronous>, transform_indices = @transform_5, window_bounds = array<i64: 1, 4>}, {transform_indices = @transform_6, window_bounds = array<i64: 1, 8, 4>}]} {
    %c0_i32 = arith.constant 0 : i32
    %0 = arith.cmpi eq, %arg2, %c0_i32 : i32
    %1 = arith.extui %0 : i1 to i32
    %c0_i32_0 = arith.constant 0 : i32
    %2 = arith.cmpi ne, %1, %c0_i32_0 : i32
    scf.if %2 {
      %cst_22 = arith.constant 0.000000e+00 : f32
      %38 = vector.broadcast %cst_22 : f32 to vector<8x16xf32>
      %c0_23 = arith.constant 0 : index
      %c0_24 = arith.constant 0 : index
      %39 = vector.load %arg10[%c0_23, %c0_24] : memref<8x16xf32, #tpu.memory_space<vmem>>, vector<8x16xf32>
      tpu.vector_store %arg10[%c0_23, %c0_24], %38 {strides = array<i32>} : memref<8x16xf32, #tpu.memory_space<vmem>>, vector<8x16xf32>,
      %cst_25 = arith.constant 0.000000e+00 : f32
      %40 = vector.broadcast %cst_25 : f32 to vector<8x1xf32>
      %c0_26 = arith.constant 0 : index
      %c0_27 = arith.constant 0 : index
      %41 = vector.load %arg11[%c0_26, %c0_27] : memref<8x1xf32, #tpu.memory_space<vmem>>, vector<8x1xf32>
      tpu.vector_store %arg11[%c0_26, %c0_27], %40 {strides = array<i32>} : memref<8x1xf32, #tpu.memory_space<vmem>>, vector<8x1xf32>,
    } else {
    }
    %c0 = arith.constant 0 : index
    %c0_1 = arith.constant 0 : index
    %3 = vector.load %arg3[%c0, %c0_1] : memref<128x32xf32, #tpu.memory_space<vmem>>, vector<128x32xf32>
    %4 = arith.truncf %3 : vector<128x32xf32> to vector<128x32xbf16>
    %c0_2 = arith.constant 0 : index
    %c0_3 = arith.constant 0 : index
    %5 = vector.load %arg5[%c0_2, %c0_3] : memref<32x16xbf16, #tpu.memory_space<vmem>>, vector<32x16xbf16>
    %cst = arith.constant dense<0.000000e+00> : vector<128x16xf32>
    %6 = tpu.matmul %4, %5, %cst {dimension_numbers = #tpu.dot_dimension_numbers<[1], [0], [0], [1], [0, 0, 1, 1], [], []>} : vector<128x32xbf16>, vector<32x16xbf16>, vector<128x16xf32> -> vector<128x16xf32>
    %c0_4 = arith.constant 0 : index
    %c0_5 = arith.constant 0 : index
    %7 = vector.load %arg6[%c0_4, %c0_5] : memref<1x16xf32, #tpu.memory_space<vmem>>, vector<1x16xf32>
    %8 = vector.broadcast %7 : vector<1x16xf32> to vector<128x16xf32>
    %9 = arith.addf %6, %8 : vector<128x16xf32>
    %10 = arith.negf %9 : vector<128x16xf32>
    %11 = math.exp %10 : vector<128x16xf32>
    %cst_6 = arith.constant 1.000000e+00 : f32
    %12 = vector.broadcast %cst_6 : f32 to vector<128x16xf32>
    %13 = arith.addf %12, %11 : vector<128x16xf32>
    %14 = arith.divf %12, %13 : vector<128x16xf32>
    %15 = arith.mulf %9, %14 : vector<128x16xf32>
    %16 = tpu.iota {dimensions = array<i32: 0>} : vector<8x1xi32>
    %c8_i32 = arith.constant 8 : i32
    %17 = arith.muli %arg1, %c8_i32 : i32
    %18 = vector.broadcast %17 : i32 to vector<8x1xi32>
    %19 = arith.addi %16, %18 : vector<8x1xi32>
    %c0_7 = arith.constant 0 : index
    %c0_8 = arith.constant 0 : index
    %20 = vector.load %arg4[%c0_7, %c0_8] : memref<1x128xi32, #tpu.memory_space<vmem>>, vector<1x128xi32>
    %21 = vector.broadcast %19 : vector<8x1xi32> to vector<8x128xi32>
    %22 = vector.broadcast %20 : vector<1x128xi32> to vector<8x128xi32>
    %23 = arith.cmpi eq, %21, %22 : vector<8x128xi32>
    %24 = arith.extui %23 : vector<8x128xi1> to vector<8x128xi32>
    %25 = arith.sitofp %24 : vector<8x128xi32> to vector<8x128xf32>
    %c0_9 = arith.constant 0 : index
    %c0_10 = arith.constant 0 : index
    %26 = vector.load %arg10[%c0_9, %c0_10] : memref<8x16xf32, #tpu.memory_space<vmem>>, vector<8x16xf32>
    %cst_11 = arith.constant dense<0.000000e+00> : vector<8x16xf32>
    %27 = tpu.matmul %25, %15, %cst_11 {dimension_numbers = #tpu.dot_dimension_numbers<[1], [0], [0], [1], [0, 0, 1, 1], [], []>} : vector<8x128xf32>, vector<128x16xf32>, vector<8x16xf32> -> vector<8x16xf32>
    %28 = arith.addf %26, %27 : vector<8x16xf32>
    %c0_12 = arith.constant 0 : index
    %c0_13 = arith.constant 0 : index
    %29 = vector.load %arg10[%c0_12, %c0_13] : memref<8x16xf32, #tpu.memory_space<vmem>>, vector<8x16xf32>
    tpu.vector_store %arg10[%c0_12, %c0_13], %28 {strides = array<i32>} : memref<8x16xf32, #tpu.memory_space<vmem>>, vector<8x16xf32>,
    %c0_14 = arith.constant 0 : index
    %c0_15 = arith.constant 0 : index
    %30 = vector.load %arg11[%c0_14, %c0_15] : memref<8x1xf32, #tpu.memory_space<vmem>>, vector<8x1xf32>
    %cst_16 = arith.constant 1.000000e+00 : f32
    %31 = vector.broadcast %cst_16 : f32 to vector<128x1xf32>
    %cst_17 = arith.constant dense<0.000000e+00> : vector<8x1xf32>
    %32 = tpu.matmul %25, %31, %cst_17 {dimension_numbers = #tpu.dot_dimension_numbers<[1], [0], [0], [1], [0, 0, 1, 1], [], []>} : vector<8x128xf32>, vector<128x1xf32>, vector<8x1xf32> -> vector<8x1xf32>
    %33 = arith.addf %30, %32 : vector<8x1xf32>
    %c0_18 = arith.constant 0 : index
    %c0_19 = arith.constant 0 : index
    %34 = vector.load %arg11[%c0_18, %c0_19] : memref<8x1xf32, #tpu.memory_space<vmem>>, vector<8x1xf32>
    tpu.vector_store %arg11[%c0_18, %c0_19], %33 {strides = array<i32>} : memref<8x1xf32, #tpu.memory_space<vmem>>, vector<8x1xf32>,
    %c0_i32_20 = arith.constant 0 : i32
    %35 = arith.cmpi eq, %arg2, %c0_i32_20 : i32
    %36 = arith.extui %35 : i1 to i32
    %c0_i32_21 = arith.constant 0 : i32
    %37 = arith.cmpi ne, %36, %c0_i32_21 : i32
    scf.if %37 {
      %c0_22 = arith.constant 0 : index
      %c0_23 = arith.constant 0 : index
      %38 = vector.load %arg10[%c0_22, %c0_23] : memref<8x16xf32, #tpu.memory_space<vmem>>, vector<8x16xf32>
      %c0_24 = arith.constant 0 : index
      %c0_25 = arith.constant 0 : index
      %39 = vector.load %arg7[%c0_24, %c0_25] : memref<16x4xf32, #tpu.memory_space<vmem>>, vector<16x4xf32>
      %cst_26 = arith.constant dense<0.000000e+00> : vector<8x4xf32>
      %40 = tpu.matmul %38, %39, %cst_26 {dimension_numbers = #tpu.dot_dimension_numbers<[1], [0], [0], [1], [0, 0, 1, 1], [], []>} : vector<8x16xf32>, vector<16x4xf32>, vector<8x4xf32> -> vector<8x4xf32>
      %c0_27 = arith.constant 0 : index
      %c0_28 = arith.constant 0 : index
      %41 = vector.load %arg11[%c0_27, %c0_28] : memref<8x1xf32, #tpu.memory_space<vmem>>, vector<8x1xf32>
      %c0_29 = arith.constant 0 : index
      %c0_30 = arith.constant 0 : index
      %42 = vector.load %arg8[%c0_29, %c0_30] : memref<1x4xf32, #tpu.memory_space<vmem>>, vector<1x4xf32>
      %43 = vector.broadcast %41 : vector<8x1xf32> to vector<8x4xf32>
      %44 = vector.broadcast %42 : vector<1x4xf32> to vector<8x4xf32>
      %45 = arith.mulf %43, %44 : vector<8x4xf32>
      %46 = arith.addf %40, %45 : vector<8x4xf32>
      %c0_31 = arith.constant 0 : index
      %c0_32 = arith.constant 0 : index
      %c0_33 = arith.constant 0 : index
      %47 = vector.load %arg9[%c0_31, %c0_32, %c0_33] : memref<1x8x4xf32, #tpu.memory_space<vmem>>, vector<1x8x4xf32>
      %48 = vector.shape_cast %47 : vector<1x8x4xf32> to vector<8x4xf32>
      %49 = vector.shape_cast %46 : vector<8x4xf32> to vector<1x8x4xf32>
      tpu.vector_store %arg9[%c0_31, %c0_32, %c0_33], %49 {strides = array<i32>} : memref<1x8x4xf32, #tpu.memory_space<vmem>>, vector<1x8x4xf32>,
    } else {
    }
    return
  }
  func.func @transform_0(%arg0: i32, %arg1: i32, %arg2: i32) -> (i32, i32) {
    %c1_i32 = arith.constant 1 : i32
    %0 = arith.muli %arg0, %c1_i32 : i32
    %1 = arith.addi %0, %arg2 : i32
    %c0_i32 = arith.constant 0 : i32
    %c0_i32_0 = arith.constant 0 : i32
    return %1, %c0_i32 : i32, i32
  }
  func.func @transform_1(%arg0: i32, %arg1: i32, %arg2: i32) -> (i32, i32) {
    %c1_i32 = arith.constant 1 : i32
    %0 = arith.muli %arg0, %c1_i32 : i32
    %1 = arith.addi %0, %arg2 : i32
    %c0_i32 = arith.constant 0 : i32
    %c0_i32_0 = arith.constant 0 : i32
    return %c0_i32, %1 : i32, i32
  }
  func.func @transform_2(%arg0: i32, %arg1: i32, %arg2: i32) -> (i32, i32) {
    %c0_i32 = arith.constant 0 : i32
    %c0_i32_0 = arith.constant 0 : i32
    %c0_i32_1 = arith.constant 0 : i32
    return %c0_i32, %c0_i32_0 : i32, i32
  }
  func.func @transform_3(%arg0: i32, %arg1: i32, %arg2: i32) -> (i32, i32) {
    %c0_i32 = arith.constant 0 : i32
    %c0_i32_0 = arith.constant 0 : i32
    %c0_i32_1 = arith.constant 0 : i32
    return %c0_i32, %c0_i32_0 : i32, i32
  }
  func.func @transform_4(%arg0: i32, %arg1: i32, %arg2: i32) -> (i32, i32) {
    %c0_i32 = arith.constant 0 : i32
    %c0_i32_0 = arith.constant 0 : i32
    %c0_i32_1 = arith.constant 0 : i32
    return %c0_i32, %c0_i32_0 : i32, i32
  }
  func.func @transform_5(%arg0: i32, %arg1: i32, %arg2: i32) -> (i32, i32) {
    %c0_i32 = arith.constant 0 : i32
    %c0_i32_0 = arith.constant 0 : i32
    %c0_i32_1 = arith.constant 0 : i32
    return %c0_i32, %c0_i32_0 : i32, i32
  }
  func.func @transform_6(%arg0: i32, %arg1: i32, %arg2: i32) -> (i32, i32, i32) {
    %c0_i32 = arith.constant 0 : i32
    %c0_i32_0 = arith.constant 0 : i32
    return %arg0, %arg1, %c0_i32 : i32, i32, i32
  }
}

</mosaic_0001>

<llo_original>
// kernel: tpu_custom_call.1
$region0: #{tpu_custom_call.1}
  #allocation0 [shape = 'u32[]', space=smem, size = 0x4, offset = 0x4, fixed_abs, tag = 'smem constant byte address 0x4 - core index']
  #allocation1 [shape = 'u32[144,128]{1,0:T(1,128)}', space=vmem, size = 0x12000, scoped, tag = 'internal scratch']
  #allocation2 [shape = 'f32[8,16]{1,0:T(8,128)}', space=vmem, size = 0x1000, scoped, tag = 'scratch operand']
  #allocation3 [shape = 'f32[8,1]{1,0:T(8,128)}', space=vmem, size = 0x1000, scoped, tag = 'scratch operand']
  %s0 = inlined_call_operand.vmem [shape: f32[128,32], index: 0, kind: input, shape index: {}]
  %s1 = inlined_call_operand.vmem [shape: s32[1,128], index: 1, kind: input, shape index: {}]
  %s2 = inlined_call_operand.vmem [shape: bf16[32,16], index: 2, kind: input, shape index: {}]
  %s3 = inlined_call_operand.vmem [shape: f32[1,16], index: 3, kind: input, shape index: {}]
  %s4 = inlined_call_operand.vmem [shape: f32[16,4], index: 4, kind: input, shape index: {}]
  %s5 = inlined_call_operand.vmem [shape: f32[1,4], index: 5, kind: input, shape index: {}]
  %s6 = inlined_call_operand.vmem [shape: f32[1,8,4], index: 6, kind: output, shape index: {}]
  %s7 = sld [smem:[#allocation0]]
  $region42: #{tpu_custom_call.1} parent=0
    _
  %s9 = ssub.s32 1, %s7
  %s10 = scalar_select 0, %s9, %s7
  // Predicated region
  $region2: #{tpu_custom_call.1} parent=0 // pred_check
    _
  $region3: #{tpu_custom_call.1} parent=0 // pred_check_branch
    %12 = sbr.rel (0) target = $region5
  $region4: #{tpu_custom_call.1} parent=0 // pred_region
    %s13 = sadd.s32 0, 0
    %s14 = smul.u32 16, %s13
    %p15 = scmp.lt.s32.totalorder %s14, 15
    %s16 = scalar_select %p15, %s14, 15
    %s17 = smul.addr %s16, 8
    %s18 = scalar_lea.vmem %s0, %s17
    %s19 = sadd.s32 0, 0
    %s20 = smul.u32 16, %s19
  $region5: #{tpu_custom_call.1} parent=0 // pred_fallthru
    _
  // Predicated region
  $region6: #{tpu_custom_call.1} parent=0 // pred_check
    _
  $region7: #{tpu_custom_call.1} parent=0 // pred_check_branch
    %22 = sbr.rel (0) target = $region9
  $region8: #{tpu_custom_call.1} parent=0 // pred_region
    %s23 = sadd.s32 0, 0
    %p24 = scmp.lt.s32.totalorder %s23, 0
    %s25 = scalar_select %p24, %s23, 0
    %s26 = scalar_lea.vmem %s1, %s25
    %s27 = sadd.s32 0, 0
  $region9: #{tpu_custom_call.1} parent=0 // pred_fallthru
    _
  // Predicated region
  $region10: #{tpu_custom_call.1} parent=0 // pred_check
    _
  $region11: #{tpu_custom_call.1} parent=0 // pred_check_branch
    %29 = sbr.rel (0) target = $region13
  $region12: #{tpu_custom_call.1} parent=0 // pred_region
    _
  $region13: #{tpu_custom_call.1} parent=0 // pred_fallthru
    _
  // Predicated region
  $region14: #{tpu_custom_call.1} parent=0 // pred_check
    _
  $region15: #{tpu_custom_call.1} parent=0 // pred_check_branch
    %31 = sbr.rel (0) target = $region17
  $region16: #{tpu_custom_call.1} parent=0 // pred_region
    _
  $region17: #{tpu_custom_call.1} parent=0 // pred_fallthru
    _
  // Predicated region
  $region18: #{tpu_custom_call.1} parent=0 // pred_check
    _
  $region19: #{tpu_custom_call.1} parent=0 // pred_check_branch
    %33 = sbr.rel (0) target = $region21
  $region20: #{tpu_custom_call.1} parent=0 // pred_region
    _
  $region21: #{tpu_custom_call.1} parent=0 // pred_fallthru
    _
  // Predicated region
  $region22: #{tpu_custom_call.1} parent=0 // pred_check
    _
  $region23: #{tpu_custom_call.1} parent=0 // pred_check_branch
    %35 = sbr.rel (0) target = $region25
  $region24: #{tpu_custom_call.1} parent=0 // pred_region
    _
  $region25: #{tpu_custom_call.1} parent=0 // pred_fallthru
    _
  %s36 = sadd.s32 0, 0
  %s37 = smul.u32 16, %s36
  %p38 = scmp.lt.s32.totalorder %s37, 15
  %s39 = scalar_select %p38, %s37, 15
  %s40 = smul.addr %s39, 8
  %s41 = scalar_lea.vmem %s0, %s40
  %s42 = sadd.s32 0, 0
  %p43 = scmp.lt.s32.totalorder %s42, 0
  %s44 = scalar_select %p43, %s42, 0
  %s45 = scalar_lea.vmem %s1, %s44
  %s46 = sadd.s32 0, 0
  %s47 = smul.u32 16, %s46
  %p48 = scmp.lt.s32.totalorder %s47, 15
  %s49 = scalar_select %p48, %s47, 15
  %s50 = smul.addr %s49, 8
  %s51 = scalar_lea.vmem %s0, %s50
  %s52 = sadd.s32 0, 0
  %s53 = smul.u32 16, %s52
  %s54 = sadd.s32 0, 0
  %p55 = scmp.lt.s32.totalorder %s54, 0
  %s56 = scalar_select %p55, %s54, 0
  %s57 = scalar_lea.vmem %s1, %s56
  %s58 = sadd.s32 0, 0
  %p60 = scmp.eq.s32.totalorder 0, 0
  // Predicated region
  $region26: #{tpu_custom_call.1} parent=0 // pred_check
    %p61 = pneg %p60
  $region27: #{tpu_custom_call.1} parent=0 // pred_check_branch
    %63 = sbr.rel (%p61) target = $region29
  $region28: #{tpu_custom_call.1} parent=0 // pred_region
    %vm64 = vcmask 130048
    %65 = vst.msk [vmem:[#allocation2] sm:$0xff] %vm64, 0.0
    %vm66 = vcmask 7168
    %67 = vst.msk [vmem:[#allocation3] sm:$0xff] %vm66, 0.0
  $region29: #{tpu_custom_call.1} parent=0 // pred_fallthru
    _
  %v68 = vld [vmem:[%s51] sm:$0xff]
  %v69 = vld [vmem:[%s51 + $0x8] sm:$0xff]
  %v70 = vld [vmem:[%s51 + $0x10] sm:$0xff]
  %v71 = vld [vmem:[%s51 + $0x18] sm:$0xff]
  %v72 = vld [vmem:[%s51 + $0x20] sm:$0xff]
  %v73 = vld [vmem:[%s51 + $0x28] sm:$0xff]
  %v74 = vld [vmem:[%s51 + $0x30] sm:$0xff]
  %v75 = vld [vmem:[%s51 + $0x38] sm:$0xff]
  %v76 = vld [vmem:[%s51 + $0x40] sm:$0xff]
  %v77 = vld [vmem:[%s51 + $0x48] sm:$0xff]
  %v78 = vld [vmem:[%s51 + $0x50] sm:$0xff]
  %v79 = vld [vmem:[%s51 + $0x58] sm:$0xff]
  %v80 = vld [vmem:[%s51 + $0x60] sm:$0xff]
  %v81 = vld [vmem:[%s51 + $0x68] sm:$0xff]
  %v82 = vld [vmem:[%s51 + $0x70] sm:$0xff]
  %v83 = vld [vmem:[%s51 + $0x78] sm:$0xff]
  %v84 = vpack.c.bf16 %v69, %v68
  %v85 = vpack.c.bf16 %v71, %v70
  %v86 = vpack.c.bf16 %v73, %v72
  %v87 = vpack.c.bf16 %v75, %v74
  %v88 = vpack.c.bf16 %v77, %v76
  %v89 = vpack.c.bf16 %v79, %v78
  %v90 = vpack.c.bf16 %v81, %v80
  %v91 = vpack.c.bf16 %v83, %v82
  %v92 = vld [vmem:[%s2] sm:$0xf]
  %v93 = vld [vmem:[%s2 + $0x4] sm:$0xf]
  %v94 = vld [vmem:[%s2 + $0x8] sm:$0xf]
  %v95 = vld [vmem:[%s2 + $0xc] sm:$0xf]
  %v96 = vld [vmem:[%s3] sm:$0x1]
  %v98 = vlaneseq
  %v99 = vshrl.u32 %v98, 7
  %v100 = vsub.s32 0, %v99
  %v101 = vrot.slane %v96, %v100
  %v107 = vunpack.c.l.b16 %v92
  %v108 = vunpack.c.l.b16 %v93
  %v109 = vunpack.c.l.b16 %v94
  %v110 = vunpack.c.l.b16 %v95
  %v111 = vpack.c.b16 %v108, %v107
  %v112 = vpack.c.b16 %v110, %v109
  %vm115 = vcmask 261120
  %v117 = vsel %vm115, %v84, 0
  %v120 = vsel %vm115, %v85, 0
  %v123 = vsel %vm115, %v86, 0
  %v126 = vsel %vm115, %v87, 0
  %v129 = vsel %vm115, %v88, 0
  %v132 = vsel %vm115, %v89, 0
  %v135 = vsel %vm115, %v90, 0
  %v138 = vsel %vm115, %v91, 0
  %140 = vmatprep.subr.bf16.mxu0 0
  %141 = vmatpush1.bf16.msra.mxu0 0
  %142 = vmatprep.subr.bf16.mxu0 0
  %143 = vmatpush1.bf16.msra.mxu0 0
  %144 = vmatprep.subr.bf16.mxu0 0
  %145 = vmatpush1.bf16.msra.mxu0 0
  %146 = vmatprep.subr.bf16.mxu0 0
  %147 = vmatpush1.bf16.msra.mxu0 0
  %148 = vmatprep.subr.bf16.mxu0 0
  %149 = vmatpush1.bf16.msra.mxu0 0
  %150 = vmatprep.subr.bf16.mxu0 0
  %151 = vmatpush1.bf16.msra.mxu0 0
  %152 = vmatprep.subr.bf16.mxu0 0
  %153 = vmatpush1.bf16.msra.mxu0 %v112
  %154 = vmatprep.subr.bf16.mxu0 0
  %155 = vmatpush1.bf16.msra.mxu0 %v111
  %156 = vmatprep.subr.bf16.mxu0 0
  %157 = vmatpush2.bf16.msra.mxu0 0
  %158 = vmatprep.subr.bf16.mxu0 0
  %159 = vmatpush2.bf16.msra.mxu0 0
  %160 = vmatprep.subr.bf16.mxu0 0
  %161 = vmatpush2.bf16.msra.mxu0 0
  %162 = vmatprep.subr.bf16.mxu0 0
  %163 = vmatpush2.bf16.msra.mxu0 0
  %164 = vmatprep.subr.bf16.mxu0 0
  %165 = vmatpush2.bf16.msra.mxu0 0
  %166 = vmatprep.subr.bf16.mxu0 0
  %167 = vmatpush2.bf16.msra.mxu0 0
  %168 = vmatprep.subr.bf16.mxu0 0
  %169 = vmatpush2.bf16.msra.mxu0 0
  %170 = vmatprep.subr.bf16.mxu0 0
  %171 = vmatpush2.bf16.msra.mxu0 0
  %172 = vmatprep.mubr.bf16.mxu0 0
  %173 = vmatmul.mubr.bf16.gmra.mxu0 %v117
  %v174 = vpop.f32.mrf.mxu0
  %v175 = vadd.f32 %v101, %v174
  %v176 = vpop.f32.mrf.mxu0
  %v177 = vpop.f32.mrf.mxu0
  %v178 = vadd.f32 %v101, %v177
  %v179 = vpop.f32.mrf.mxu0
  %180 = vmatprep.mubr.bf16.mxu0 0
  %181 = vmatmul.mubr.bf16.gmra.mxu0 %v120
  %v182 = vpop.f32.mrf.mxu0
  %v183 = vadd.f32 %v101, %v182
  %v184 = vpop.f32.mrf.mxu0
  %v185 = vpop.f32.mrf.mxu0
  %v186 = vadd.f32 %v101, %v185
  %v187 = vpop.f32.mrf.mxu0
  %188 = vmatprep.mubr.bf16.mxu0 0
  %189 = vmatmul.mubr.bf16.gmra.mxu0 %v123
  %v190 = vpop.f32.mrf.mxu0
  %v191 = vadd.f32 %v101, %v190
  %v192 = vpop.f32.mrf.mxu0
  %v193 = vpop.f32.mrf.mxu0
  %v194 = vadd.f32 %v101, %v193
  %v195 = vpop.f32.mrf.mxu0
  %196 = vmatprep.mubr.bf16.mxu0 0
  %197 = vmatmul.mubr.bf16.gmra.mxu0 %v126
  %v198 = vpop.f32.mrf.mxu0
  %v199 = vadd.f32 %v101, %v198
  %v200 = vpop.f32.mrf.mxu0
  %v201 = vpop.f32.mrf.mxu0
  %v202 = vadd.f32 %v101, %v201
  %v203 = vpop.f32.mrf.mxu0
  %204 = vmatprep.mubr.bf16.mxu0 0
  %205 = vmatmul.mubr.bf16.gmra.mxu0 %v129
  %v206 = vpop.f32.mrf.mxu0
  %v207 = vadd.f32 %v101, %v206
  %v208 = vpop.f32.mrf.mxu0
  %v209 = vpop.f32.mrf.mxu0
  %v210 = vadd.f32 %v101, %v209
  %v211 = vpop.f32.mrf.mxu0
  %212 = vmatprep.mubr.bf16.mxu0 0
  %213 = vmatmul.mubr.bf16.gmra.mxu0 %v132
  %v214 = vpop.f32.mrf.mxu0
  %v215 = vadd.f32 %v101, %v214
  %v216 = vpop.f32.mrf.mxu0
  %v217 = vpop.f32.mrf.mxu0
  %v218 = vadd.f32 %v101, %v217
  %v219 = vpop.f32.mrf.mxu0
  %220 = vmatprep.mubr.bf16.mxu0 0
  %221 = vmatmul.mubr.bf16.gmra.mxu0 %v135
  %v222 = vpop.f32.mrf.mxu0
  %v223 = vadd.f32 %v101, %v222
  %v224 = vpop.f32.mrf.mxu0
  %v225 = vpop.f32.mrf.mxu0
  %v226 = vadd.f32 %v101, %v225
  %v227 = vpop.f32.mrf.mxu0
  %228 = vmatprep.mubr.bf16.mxu0 0
  %229 = vmatmul.mubr.bf16.gmra.mxu0 %v138
  %v230 = vpop.f32.mrf.mxu0
  %v231 = vadd.f32 %v101, %v230
  %v232 = vpop.f32.mrf.mxu0
  %v233 = vpop.f32.mrf.mxu0
  %v234 = vadd.f32 %v101, %v233
  %v235 = vpop.f32.mrf.mxu0
  %236 = vdwg.mxu0
  %v237 = vxor.u32 %v175, 2147483648
  %v238 = vxor.u32 %v178, 2147483648
  %v239 = vxor.u32 %v183, 2147483648
  %v240 = vxor.u32 %v186, 2147483648
  %v241 = vxor.u32 %v191, 2147483648
  %v242 = vxor.u32 %v194, 2147483648
  %v243 = vxor.u32 %v199, 2147483648
  %v244 = vxor.u32 %v202, 2147483648
  %v245 = vxor.u32 %v207, 2147483648
  %v246 = vxor.u32 %v210, 2147483648
  %v247 = vxor.u32 %v215, 2147483648
  %v248 = vxor.u32 %v218, 2147483648
  %v249 = vxor.u32 %v223, 2147483648
  %v250 = vxor.u32 %v226, 2147483648
  %v251 = vxor.u32 %v231, 2147483648
  %v252 = vxor.u32 %v234, 2147483648
  %v253 = vmul.f32 %v237, 1.442695
  %v254 = vpow.pop %v253
  %v255 = vmul.f32 %v238, 1.442695
  %v256 = vpow.pop %v255
  %v257 = vmul.f32 %v239, 1.442695
  %v258 = vpow.pop %v257
  %v259 = vmul.f32 %v240, 1.442695
  %v260 = vpow.pop %v259
  %v261 = vmul.f32 %v241, 1.442695
  %v262 = vpow.pop %v261
  %v263 = vmul.f32 %v242, 1.442695
  %v264 = vpow.pop %v263
  %v265 = vmul.f32 %v243, 1.442695
  %v266 = vpow.pop %v265
  %v267 = vmul.f32 %v244, 1.442695
  %v268 = vpow.pop %v267
  %v269 = vmul.f32 %v245, 1.442695
  %v270 = vpow.pop %v269
  %v271 = vmul.f32 %v246, 1.442695
  %v272 = vpow.pop %v271
  %v273 = vmul.f32 %v247, 1.442695
  %v274 = vpow.pop %v273
  %v275 = vmul.f32 %v248, 1.442695
  %v276 = vpow.pop %v275
  %v277 = vmul.f32 %v249, 1.442695
  %v278 = vpow.pop %v277
  %v279 = vmul.f32 %v250, 1.442695
  %v280 = vpow.pop %v279
  %v281 = vmul.f32 %v251, 1.442695
  %v282 = vpow.pop %v281
  %v283 = vmul.f32 %v252, 1.442695
  %v284 = vpow.pop %v283
  %v285 = vadd.f32 %v254, 1.0
  %v286 = vadd.f32 %v256, 1.0
  %v287 = vadd.f32 %v258, 1.0
  %v288 = vadd.f32 %v260, 1.0
  %v289 = vadd.f32 %v262, 1.0
  %v290 = vadd.f32 %v264, 1.0
  %v291 = vadd.f32 %v266, 1.0
  %v292 = vadd.f32 %v268, 1.0
  %v293 = vadd.f32 %v270, 1.0
  %v294 = vadd.f32 %v272, 1.0
  %v295 = vadd.f32 %v274, 1.0
  %v296 = vadd.f32 %v276, 1.0
  %v297 = vadd.f32 %v278, 1.0
  %v298 = vadd.f32 %v280, 1.0
  %v299 = vadd.f32 %v282, 1.0
  %v300 = vadd.f32 %v284, 1.0
  %v301 = vrcp.pop %v285
  %v302 = vmul.f32 1.0, %v301
  %v303 = vrcp.pop %v286
  %v304 = vmul.f32 1.0, %v303
  %v305 = vrcp.pop %v287
  %v306 = vmul.f32 1.0, %v305
  %v307 = vrcp.pop %v288
  %v308 = vmul.f32 1.0, %v307
  %v309 = vrcp.pop %v289
  %v310 = vmul.f32 1.0, %v309
  %v311 = vrcp.pop %v290
  %v312 = vmul.f32 1.0, %v311
  %v313 = vrcp.pop %v291
  %v314 = vmul.f32 1.0, %v313
  %v315 = vrcp.pop %v292
  %v316 = vmul.f32 1.0, %v315
  %v317 = vrcp.pop %v293
  %v318 = vmul.f32 1.0, %v317
  %v319 = vrcp.pop %v294
  %v320 = vmul.f32 1.0, %v319
  %v321 = vrcp.pop %v295
  %v322 = vmul.f32 1.0, %v321
  %v323 = vrcp.pop %v296
  %v324 = vmul.f32 1.0, %v323
  %v325 = vrcp.pop %v297
  %v326 = vmul.f32 1.0, %v325
  %v327 = vrcp.pop %v298
  %v328 = vmul.f32 1.0, %v327
  %v329 = vrcp.pop %v299
  %v330 = vmul.f32 1.0, %v329
  %v331 = vrcp.pop %v300
  %v332 = vmul.f32 1.0, %v331
  %v333 = vmul.f32 %v175, %v302
  %v334 = vmul.f32 %v178, %v304
  %v335 = vmul.f32 %v183, %v306
  %v336 = vmul.f32 %v186, %v308
  %v337 = vmul.f32 %v191, %v310
  %v338 = vmul.f32 %v194, %v312
  %v339 = vmul.f32 %v199, %v314
  %v340 = vmul.f32 %v202, %v316
  %v341 = vmul.f32 %v207, %v318
  %v342 = vmul.f32 %v210, %v320
  %v343 = vmul.f32 %v215, %v322
  %v344 = vmul.f32 %v218, %v324
  %v345 = vmul.f32 %v223, %v326
  %v346 = vmul.f32 %v226, %v328
  %v347 = vmul.f32 %v231, %v330
  %v348 = vmul.f32 %v234, %v332
  %v349 = vlaneseq
  %v350 = vshrl.u32 %v349, 7
  %s351 = smul.u32 0, 8
  %v352 = vstv %s351
  %v353 = vadd.s32 %v350, %v352
  %v354 = vld [vmem:[%s57] sm:$0x1]
  %v355 = vlaneseq
  %v356 = vshrl.u32 %v355, 7
  %v357 = vsub.s32 0, %v356
  %v358 = vrot.slane %v354, %v357
  %vm359 = vcmp.eq.s32.totalorder %v353, %v358
  %v360 = vsel %vm359, 1, 0
  %v361 = vcvt.s32.f32 %v360
  %v362 = vld [vmem:[#allocation2] sm:$0xff]
  %363 = vmatprep.subr.mxu0 0.0
  %364 = vmatpush1.msra.mxu0 %v348
  %365 = vmatprep.subr.mxu0 0.0
  %366 = vmatpush1.msra.mxu0 %v347
  %367 = vmatprep.subr.mxu0 0.0
  %368 = vmatpush1.msra.mxu0 %v346
  %369 = vmatprep.subr.mxu0 0.0
  %370 = vmatpush1.msra.mxu0 %v345
  %371 = vmatprep.subr.mxu0 0.0
  %372 = vmatpush1.msra.mxu0 %v344
  %373 = vmatprep.subr.mxu0 0.0
  %374 = vmatpush1.msra.mxu0 %v343
  %375 = vmatprep.subr.mxu0 0.0
  %376 = vmatpush1.msra.mxu0 %v342
  %377 = vmatprep.subr.mxu0 0.0
  %378 = vmatpush1.msra.mxu0 %v341
  %379 = vmatprep.subr.mxu0 0.0
  %380 = vmatpush1.msra.mxu0 %v340
  %381 = vmatprep.subr.mxu0 0.0
  %382 = vmatpush1.msra.mxu0 %v339
  %383 = vmatprep.subr.mxu0 0.0
  %384 = vmatpush1.msra.mxu0 %v338
  %385 = vmatprep.subr.mxu0 0.0
  %386 = vmatpush1.msra.mxu0 %v337
  %387 = vmatprep.subr.mxu0 0.0
  %388 = vmatpush1.msra.mxu0 %v336
  %389 = vmatprep.subr.mxu0 0.0
  %390 = vmatpush1.msra.mxu0 %v335
  %391 = vmatprep.subr.mxu0 0.0
  %392 = vmatpush1.msra.mxu0 %v334
  %393 = vmatprep.subr.mxu0 0.0
  %394 = vmatpush1.msra.mxu0 %v333
  %395 = vmatprep.subr.mxu0 0.0
  %396 = vmatpush2.msra.mxu0 0.0
  %397 = vmatprep.subr.mxu0 0.0
  %398 = vmatpush2.msra.mxu0 0.0
  %399 = vmatprep.subr.mxu0 0.0
  %400 = vmatpush2.msra.mxu0 0.0
  %401 = vmatprep.subr.mxu0 0.0
  %402 = vmatpush2.msra.mxu0 0.0
  %403 = vmatprep.subr.mxu0 0.0
  %404 = vmatpush2.msra.mxu0 0.0
  %405 = vmatprep.subr.mxu0 0.0
  %406 = vmatpush2.msra.mxu0 0.0
  %407 = vmatprep.subr.mxu0 0.0
  %408 = vmatpush2.msra.mxu0 0.0
  %409 = vmatprep.subr.mxu0 0.0
  %410 = vmatpush2.msra.mxu0 0.0
  %411 = vmatprep.subr.mxu0 0.0
  %412 = vmatpush2.msra.mxu0 0.0
  %413 = vmatprep.subr.mxu0 0.0
  %414 = vmatpush2.msra.mxu0 0.0
  %415 = vmatprep.subr.mxu0 0.0
  %416 = vmatpush2.msra.mxu0 0.0
  %417 = vmatprep.subr.mxu0 0.0
  %418 = vmatpush2.msra.mxu0 0.0
  %419 = vmatprep.subr.mxu0 0.0
  %420 = vmatpush2.msra.mxu0 0.0
  %421 = vmatprep.subr.mxu0 0.0
  %422 = vmatpush2.msra.mxu0 0.0
  %423 = vmatprep.subr.mxu0 0.0
  %424 = vmatpush2.msra.mxu0 0.0
  %425 = vmatprep.subr.mxu0 0.0
  %426 = vmatpush2.msra.mxu0 0.0
  %427 = vmatprep.mubr.f32.mxu0 0.0
  %428 = vmatmul.mubr.f32.gmra.mxu0 %v361
  %v429 = vpop.f32.mrf.mxu0
  %v430 = vadd.f32 0.0, %v429
  %v431 = vpop.f32.mrf.mxu0
  %432 = vdwg.mxu0
  %v433 = vadd.f32 %v362, %v430
  %vm434 = vcmask 130048
  %435 = vst.msk [vmem:[#allocation2] sm:$0xff] %vm434, %v433
  %v436 = vld [vmem:[#allocation3] sm:$0xff]
  %437 = vmatprep.subr.mxu0 0.0
  %438 = vmatpush1.msra.mxu0 1.0
  %439 = vmatprep.subr.mxu0 0.0
  %440 = vmatpush1.msra.mxu0 1.0
  %441 = vmatprep.subr.mxu0 0.0
  %442 = vmatpush1.msra.mxu0 1.0
  %443 = vmatprep.subr.mxu0 0.0
  %444 = vmatpush1.msra.mxu0 1.0
  %445 = vmatprep.subr.mxu0 0.0
  %446 = vmatpush1.msra.mxu0 1.0
  %447 = vmatprep.subr.mxu0 0.0
  %448 = vmatpush1.msra.mxu0 1.0
  %449 = vmatprep.subr.mxu0 0.0
  %450 = vmatpush1.msra.mxu0 1.0
  %451 = vmatprep.subr.mxu0 0.0
  %452 = vmatpush1.msra.mxu0 1.0
  %453 = vmatprep.subr.mxu0 0.0
  %454 = vmatpush1.msra.mxu0 1.0
  %455 = vmatprep.subr.mxu0 0.0
  %456 = vmatpush1.msra.mxu0 1.0
  %457 = vmatprep.subr.mxu0 0.0
  %458 = vmatpush1.msra.mxu0 1.0
  %459 = vmatprep.subr.mxu0 0.0
  %460 = vmatpush1.msra.mxu0 1.0
  %461 = vmatprep.subr.mxu0 0.0
  %462 = vmatpush1.msra.mxu0 1.0
  %463 = vmatprep.subr.mxu0 0.0
  %464 = vmatpush1.msra.mxu0 1.0
  %465 = vmatprep.subr.mxu0 0.0
  %466 = vmatpush1.msra.mxu0 1.0
  %467 = vmatprep.subr.mxu0 0.0
  %468 = vmatpush1.msra.mxu0 1.0
  %469 = vmatprep.subr.mxu0 0.0
  %470 = vmatpush2.msra.mxu0 0.0
  %471 = vmatprep.subr.mxu0 0.0
  %472 = vmatpush2.msra.mxu0 0.0
  %473 = vmatprep.subr.mxu0 0.0
  %474 = vmatpush2.msra.mxu0 0.0
  %475 = vmatprep.subr.mxu0 0.0
  %476 = vmatpush2.msra.mxu0 0.0
  %477 = vmatprep.subr.mxu0 0.0
  %478 = vmatpush2.msra.mxu0 0.0
  %479 = vmatprep.subr.mxu0 0.0
  %480 = vmatpush2.msra.mxu0 0.0
  %481 = vmatprep.subr.mxu0 0.0
  %482 = vmatpush2.msra.mxu0 0.0
  %483 = vmatprep.subr.mxu0 0.0
  %484 = vmatpush2.msra.mxu0 0.0
  %485 = vmatprep.subr.mxu0 0.0
  %486 = vmatpush2.msra.mxu0 0.0
  %487 = vmatprep.subr.mxu0 0.0
  %488 = vmatpush2.msra.mxu0 0.0
  %489 = vmatprep.subr.mxu0 0.0
  %490 = vmatpush2.msra.mxu0 0.0
  %491 = vmatprep.subr.mxu0 0.0
  %492 = vmatpush2.msra.mxu0 0.0
  %493 = vmatprep.subr.mxu0 0.0
  %494 = vmatpush2.msra.mxu0 0.0
  %495 = vmatprep.subr.mxu0 0.0
  %496 = vmatpush2.msra.mxu0 0.0
  %497 = vmatprep.subr.mxu0 0.0
  %498 = vmatpush2.msra.mxu0 0.0
  %499 = vmatprep.subr.mxu0 0.0
  %500 = vmatpush2.msra.mxu0 0.0
  %501 = vmatprep.mubr.f32.mxu0 0.0
  %502 = vmatmul.mubr.f32.gmra.mxu0 %v361
  %v503 = vpop.f32.mrf.mxu0
  %v504 = vadd.f32 0.0, %v503
  %v505 = vpop.f32.mrf.mxu0
  %506 = vdwg.mxu0
  %v507 = vadd.f32 %v436, %v504
  %vm508 = vcmask 7168
  %509 = vst.msk [vmem:[#allocation3] sm:$0xff] %vm508, %v507
  // Predicated region
  $region30: #{tpu_custom_call.1} parent=0 // pred_check
    %p510 = pneg %p60
  $region31: #{tpu_custom_call.1} parent=0 // pred_check_branch
    %512 = sbr.rel (%p510) target = $region33
  $region32: #{tpu_custom_call.1} parent=0 // pred_region
    %v513 = vld [vmem:[#allocation2] sm:$0xff]
    %v514 = vld [vmem:[%s4] sm:$0xff]
    %v515 = vld [vmem:[%s4 + $0x8] sm:$0xff]
    %v516 = vld [vmem:[#allocation3] sm:$0xff]
    %v517 = vld [vmem:[%s5] sm:$0x1]
    %519 = vset.pattern.permute.xlu0 0
    %520 = vperm.xlu0 %519, %v516
    %v521 = vpop.permute.xlu0 %520
    %v524 = vlaneseq
    %v525 = vshrl.u32 %v524, 7
    %v526 = vsub.s32 0, %v525
    %v527 = vrot.slane %v517, %v526
    %v529 = vmul.f32 %v521, %v527
    %v531 = vsel %vm434, %v513, 0
    %533 = vmatprep.subr.mxu0 0.0
    %534 = vmatpush1.msra.mxu0 0.0
    %535 = vmatprep.subr.mxu0 0.0
    %536 = vmatpush1.msra.mxu0 0.0
    %537 = vmatprep.subr.mxu0 0.0
    %538 = vmatpush1.msra.mxu0 0.0
    %539 = vmatprep.subr.mxu0 0.0
    %540 = vmatpush1.msra.mxu0 0.0
    %541 = vmatprep.subr.mxu0 0.0
    %542 = vmatpush1.msra.mxu0 0.0
    %543 = vmatprep.subr.mxu0 0.0
    %544 = vmatpush1.msra.mxu0 0.0
    %545 = vmatprep.subr.mxu0 0.0
    %546 = vmatpush1.msra.mxu0 0.0
    %547 = vmatprep.subr.mxu0 0.0
    %548 = vmatpush1.msra.mxu0 0.0
    %549 = vmatprep.subr.mxu0 0.0
    %550 = vmatpush1.msra.mxu0 0.0
    %551 = vmatprep.subr.mxu0 0.0
    %552 = vmatpush1.msra.mxu0 0.0
    %553 = vmatprep.subr.mxu0 0.0
    %554 = vmatpush1.msra.mxu0 0.0
    %555 = vmatprep.subr.mxu0 0.0
    %556 = vmatpush1.msra.mxu0 0.0
    %557 = vmatprep.subr.mxu0 0.0
    %558 = vmatpush1.msra.mxu0 0.0
    %559 = vmatprep.subr.mxu0 0.0
    %560 = vmatpush1.msra.mxu0 0.0
    %561 = vmatprep.subr.mxu0 0.0
    %562 = vmatpush1.msra.mxu0 %v515
    %563 = vmatprep.subr.mxu0 0.0
    %564 = vmatpush1.msra.mxu0 %v514
    %565 = vmatprep.subr.mxu0 0.0
    %566 = vmatpush2.msra.mxu0 0.0
    %567 = vmatprep.subr.mxu0 0.0
    %568 = vmatpush2.msra.mxu0 0.0
    %569 = vmatprep.subr.mxu0 0.0
    %570 = vmatpush2.msra.mxu0 0.0
    %571 = vmatprep.subr.mxu0 0.0
    %572 = vmatpush2.msra.mxu0 0.0
    %573 = vmatprep.subr.mxu0 0.0
    %574 = vmatpush2.msra.mxu0 0.0
    %575 = vmatprep.subr.mxu0 0.0
    %576 = vmatpush2.msra.mxu0 0.0
    %577 = vmatprep.subr.mxu0 0.0
    %578 = vmatpush2.msra.mxu0 0.0
    %579 = vmatprep.subr.mxu0 0.0
    %580 = vmatpush2.msra.mxu0 0.0
    %581 = vmatprep.subr.mxu0 0.0
    %582 = vmatpush2.msra.mxu0 0.0
    %583 = vmatprep.subr.mxu0 0.0
    %584 = vmatpush2.msra.mxu0 0.0
    %585 = vmatprep.subr.mxu0 0.0
    %586 = vmatpush2.msra.mxu0 0.0
    %587 = vmatprep.subr.mxu0 0.0
    %588 = vmatpush2.msra.mxu0 0.0
    %589 = vmatprep.subr.mxu0 0.0
    %590 = vmatpush2.msra.mxu0 0.0
    %591 = vmatprep.subr.mxu0 0.0
    %592 = vmatpush2.msra.mxu0 0.0
    %593 = vmatprep.subr.mxu0 0.0
    %594 = vmatpush2.msra.mxu0 0.0
    %595 = vmatprep.subr.mxu0 0.0
    %596 = vmatpush2.msra.mxu0 0.0
    %597 = vmatprep.mubr.f32.mxu0 0.0
    %598 = vmatmul.mubr.f32.gmra.mxu0 %v531
    %v599 = vpop.f32.mrf.mxu0
    %v600 = vadd.f32 %v529, %v599
    %v601 = vpop.f32.mrf.mxu0
    %602 = vdwg.mxu0
    %vm603 = vcmask 31744
    %604 = vst.msk [vmem:[%s6] sm:$0xff] %vm603, %v600
  $region33: #{tpu_custom_call.1} parent=0 // pred_fallthru
    _
  // Predicated region
  $region34: #{tpu_custom_call.1} parent=0 // pred_check
    _
  $region35: #{tpu_custom_call.1} parent=0 // pred_check_branch
    %606 = sbr.rel (0) target = $region37
  $region36: #{tpu_custom_call.1} parent=0 // pred_region
    _
  $region37: #{tpu_custom_call.1} parent=0 // pred_fallthru
    _
  // Predicated region
  $region38: #{tpu_custom_call.1} parent=0 // pred_check
    _
  $region39: #{tpu_custom_call.1} parent=0 // pred_check_branch
    %608 = sbr.rel (0) target = $region41
  $region40: #{tpu_custom_call.1} parent=0 // pred_region
    _
  $region41: #{tpu_custom_call.1} parent=0 // pred_fallthru
    _

</llo_original>
